<compile_context>
chip_gen: v5e
topology: v5e:2x2
jax: 0.10.0
libtpu: 0.0.40
codegen_flags: <defaults>
</compile_context>

<pallas_src>
import functools
import math

import jax
import jax.numpy as jnp
from jax.experimental import pallas as pl
from jax.experimental.pallas import tpu as pltpu


_LANE = 128
_MIB = 1024 * 1024


def _round_up(x, m):
    return -(-x // m) * m


# ----------------------------------------------------------------------------
# Runtime capability probes (eager, cached once)
# ----------------------------------------------------------------------------
@functools.lru_cache(maxsize=1)
def _vmem_budget_bytes():
    """(budget, limit_cap) derived from the physical VMEM of this generation."""
    try:
        info = pltpu.get_tpu_info()
        phys = int(getattr(info, "vmem_capacity_bytes", 0) or 0)
    except Exception:
        phys = 0
    if phys < 32 * _MIB:
        phys = 64 * _MIB          # conservative fallback: assume v7x-class VMEM
    budget = int(phys * 0.78)     # 128 MiB -> ~100 MiB, 64 MiB -> ~50 MiB
    cap = int(phys * 0.85)
    return budget, cap


@functools.lru_cache(maxsize=1)
def _single_buffer_w_supported():
    """Probe pipeline_mode=pl.Buffered(1) for a grid-constant operand."""
    try:
        def _k(x_ref, w_ref, o_ref):
            o_ref[...] = x_ref[...] + w_ref[...]

        f = pl.pallas_call(
            _k,
            out_shape=jax.ShapeDtypeStruct((16, _LANE), jnp.float32),
            grid_spec=pltpu.PrefetchScalarGridSpec(
                num_scalar_prefetch=0,
                grid=(2,),
                in_specs=[
                    pl.BlockSpec((8, _LANE), lambda i: (i, 0)),
                    pl.BlockSpec((8, _LANE), lambda i: (0, 0),
                                 pipeline_mode=pl.Buffered(1)),
                ],
                out_specs=pl.BlockSpec((8, _LANE), lambda i: (i, 0)),
            ),
        )
        x = jnp.ones((16, _LANE), jnp.float32)
        w = jnp.ones((8, _LANE), jnp.float32)
        r = jax.block_until_ready(f(x, w))
        return bool(jnp.allclose(r, 2.0))
    except Exception:
        return False


# ----------------------------------------------------------------------------
# Parameter setup (mirrors DHT._precompute + IDHT type2type mapping)
# ----------------------------------------------------------------------------
def make_idht_matrix(dht_length, dht_type=2, dtype=jnp.float32):
    """W[n, k] = cas(2*pi*(n+dn)*(k+dk)/L) / sqrt(L), with the IDHT type map."""
    assert 1 <= dht_length
    assert 1 <= dht_type <= 4
    type2type = {1: 1, 2: 3, 3: 2, 4: 4}
    t = type2type[dht_type]
    L = dht_length
    n = jnp.arange(L, dtype=jnp.float32)
    k = jnp.arange(L, dtype=jnp.float32)
    if t in (2, 4):
        n = n + 0.5
    if t in (3, 4):
        k = k + 0.5
    theta = (2.0 * jnp.pi / L) * n[:, None] * k[None, :]
    W = (jnp.cos(theta) + jnp.sin(theta)) * (L ** -0.5)   # cas(x) = cos + sin
    return W.astype(dtype)


def _pack_factor(L, max_width=1024):
    """How many independent length-L transforms to fuse per matmul row."""
    if L >= _LANE:
        return 1
    P = _LANE // math.gcd(L, _LANE)          # smallest P with (P*L) % 128 == 0
    if P * L > max_width:
        P = -(-_LANE // L)                   # ceil(128/L): >=128 wide (unaligned)
    return P


def make_packed_idht_matrix(W, pack):
    """Block-diagonal kron(I_P, W): exact packing of P transforms per row."""
    if pack == 1:
        return W
    return jnp.kron(jnp.eye(pack, dtype=W.dtype), W)


# ----------------------------------------------------------------------------
# Pallas kernels
# ----------------------------------------------------------------------------
def _idht_kernel(y_ref, w_ref, o_ref):
    o_ref[...] = jnp.dot(
        y_ref[...], w_ref[...], preferred_element_type=jnp.float32
    ).astype(o_ref.dtype)


def _idht_kernel_blocked(y_ref, w_ref, o_ref, acc_ref):
    @pl.when(pl.program_id(2) == 0)
    def _():
        acc_ref[...] = jnp.zeros_like(acc_ref)

    acc_ref[...] += jnp.dot(
        y_ref[...], w_ref[...], preferred_element_type=jnp.float32
    )

    @pl.when(pl.program_id(2) == pl.num_programs(2) - 1)
    def _():
        o_ref[...] = acc_ref[...].astype(o_ref.dtype)


# ----------------------------------------------------------------------------
# pallas_call dispatcher: (B, N) x (N, N) -> (B, N)
# ----------------------------------------------------------------------------
@functools.partial(jax.jit, static_argnames=("tm", "mode", "single_w"))
def _idht_matmul(y2d, W, *, tm=None, mode=None, single_w=False):
    """mode: None (auto) | 'resident' | 'nblocked' | 'kblocked'."""
    B, N = y2d.shape
    assert W.shape == (N, N)
    in_item = y2d.dtype.itemsize
    w_item = W.dtype.itemsize
    out_dtype = y2d.dtype
    out_item = out_dtype.itemsize
    budget, cap = _vmem_budget_bytes()

    def vmem_limit(need):
        return int(min(cap, max(32 * _MIB, need * 5 // 4)))

    # ---- row tile request (trace-time Python ints) ---------------------------
    b8 = max(8, _round_up(B, 8))
    tm_req = tm if tm is not None else (2048 if N <= 512 else 1024)
    tm0 = max(8, min(_round_up(tm_req, 8), b8))
    # v7x megacore: keep >= 2 row tiles so the "parallel" axis feeds both cores.
    if -(-B // tm0) == 1 and B >= 16:
        tm0 = max(8, _round_up(-(-B // 2), 8))

    w_bufs = 1 if single_w else 2            # single-buffered constant W if supported
    w_vmem = w_bufs * N * N * w_item

    def est_resident(t):
        return 2 * t * N * (in_item + out_item) + w_vmem

    sel = mode
    if sel is None:
        sel = "resident" if est_resident(8) <= budget else "nblocked"

    flops = 2 * B * N * N

    # ---------------------------------------------------------------- resident
    if sel == "resident":
        tm_sel = tm0
        while tm_sel > 8 and est_resident(tm_sel) > budget:
            tm_sel = max(8, (tm_sel // 2) // 8 * 8)
        need = est_resident(tm_sel)

        if single_w:
            w_spec = pl.BlockSpec((N, N), lambda i: (0, 0),
                                  pipeline_mode=pl.Buffered(1))
        else:
            w_spec = pl.BlockSpec((N, N), lambda i: (0, 0))

        cost = pl.CostEstimate(
            flops=flops, transcendentals=0,
            bytes_accessed=B * N * (in_item + out_item) + N * N * w_item)

        return pl.pallas_call(
            _idht_kernel,
            out_shape=jax.ShapeDtypeStruct((B, N), out_dtype),
            grid_spec=pltpu.PrefetchScalarGridSpec(
                num_scalar_prefetch=0,
                grid=(pl.cdiv(B, tm_sel),),          # ragged last block: no pad
                in_specs=[pl.BlockSpec((tm_sel, N), lambda i: (i, 0)), w_spec],
                out_specs=pl.BlockSpec((tm_sel, N), lambda i: (i, 0)),
            ),
            compiler_params=pltpu.CompilerParams(
                dimension_semantics=("parallel",),
                vmem_limit_bytes=vmem_limit(need)),
            cost_estimate=cost,
        )(y2d, W)

    # ---- shared tile candidates for the blocked paths ------------------------
    col_cands = [t for t in (1024, 512, 256, 128) if t <= _round_up(N, _LANE)]
    if not col_cands:
        col_cands = [_LANE]
    row_cands = sorted({tm0} | {t for t in (2048, 1024, 512, 256, 128, 64, 32, 16, 8)
                                if t <= tm0}, reverse=True)

    if sel == "kblocked" and not any(N % t == 0 for t in (1024, 512, 256, 128)):
        sel = "nblocked"   # K blocking needs an exact K tile; fall back.

    # ---------------------------------------------------------------- nblocked
    if sel == "nblocked":
        def est_nb(t_m, t_n):
            return (2 * t_m * N * in_item + 2 * N * t_n * w_item
                    + 2 * t_m * t_n * out_item)

        best = None
        for t_n in col_cands:
            for t_m in row_cands:
                if est_nb(t_m, t_n) <= budget:
                    score = (1 if N % t_n == 0 else 0, t_m * t_n, t_n)
                    if best is None or score > best[0]:
                        best = (score, t_m, t_n)
                    break                      # first (largest) fitting t_m
        if best is None:
            # TODO(synk): N too large even for the minimal column strip within
            # the VMEM budget; use minimal tiles and the full VMEM limit.
            best = ((0, 0, 0), 8, _LANE)
        _, t_m, t_n = best
        need = est_nb(t_m, t_n)

        cost = pl.CostEstimate(
            flops=flops, transcendentals=0,
            bytes_accessed=(B * N * (in_item + out_item)
                            + N * N * w_item * pl.cdiv(B, t_m)))

        return pl.pallas_call(
            _idht_kernel,
            out_shape=jax.ShapeDtypeStruct((B, N), out_dtype),
            grid_spec=pltpu.PrefetchScalarGridSpec(
                num_scalar_prefetch=0,
                grid=(pl.cdiv(B, t_m), pl.cdiv(N, t_n)),
                in_specs=[
                    pl.BlockSpec((t_m, N), lambda i, j: (i, 0)),   # y strip resident per i
                    pl.BlockSpec((N, t_n), lambda i, j: (0, j)),   # W column strip
                ],
                out_specs=pl.BlockSpec((t_m, t_n), lambda i, j: (i, j)),
            ),
            compiler_params=pltpu.CompilerParams(
                dimension_semantics=("parallel", "parallel"),
                vmem_limit_bytes=vmem_limit(need)),
            cost_estimate=cost,
        )(y2d, W)

    # ---------------------------------------------------------------- kblocked
    tk_cands = [t for t in (1024, 512, 256, 128) if N % t == 0]

    def est_kb(t_m, t_n, t_k):
        return (2 * t_m * t_k * in_item + 2 * t_k * t_n * w_item
                + 2 * t_m * t_n * out_item + t_m * t_n * 4)

    best = None
    for t_k in tk_cands:
        for t_n in col_cands:
            for t_m in row_cands:
                if est_kb(t_m, t_n, t_k) <= budget:
                    score = (1 if N % t_n == 0 else 0, t_m * t_n * t_k)
                    if best is None or score > best[0]:
                        best = (score, t_m, t_n, t_k)
                    break
    if best is None:
        best = ((0, 0), 8, _LANE, tk_cands[-1])
    _, t_m, t_n, t_k = best
    need = est_kb(t_m, t_n, t_k)

    cost = pl.CostEstimate(
        flops=flops, transcendentals=0,
        bytes_accessed=(B * N * in_item * pl.cdiv(N, t_n)
                        + N * N * w_item * pl.cdiv(B, t_m)
                        + B * N * out_item))

    return pl.pallas_call(
        _idht_kernel_blocked,
        out_shape=jax.ShapeDtypeStruct((B, N), out_dtype),
        grid_spec=pltpu.PrefetchScalarGridSpec(
            num_scalar_prefetch=0,
            grid=(pl.cdiv(B, t_m), pl.cdiv(N, t_n), N // t_k),
            in_specs=[
                pl.BlockSpec((t_m, t_k), lambda i, j, k: (i, k)),
                pl.BlockSpec((t_k, t_n), lambda i, j, k: (k, j)),
            ],
            out_specs=pl.BlockSpec((t_m, t_n), lambda i, j, k: (i, j)),
            scratch_shapes=[pltpu.VMEM((t_m, t_n), jnp.float32)],
        ),
        compiler_params=pltpu.CompilerParams(
            dimension_semantics=("parallel", "parallel", "arbitrary"),
            vmem_limit_bytes=vmem_limit(need)),
        cost_estimate=cost,
    )(y2d, W)


# ----------------------------------------------------------------------------
# Full forward: flatten -> (optional) pack -> matmul -> reshape
# ----------------------------------------------------------------------------
@functools.partial(jax.jit, static_argnames=("pack", "tm", "mode", "single_w"))
def _idht_apply(y, W, Wb, *, pack, tm=None, mode=None, single_w=False):
    L = W.shape[0]
    N = Wb.shape[0]
    assert N == pack * L
    lead = y.shape[:-1]
    y2d = y.reshape(-1, L)
    B = y2d.shape[0]

    if pack == 1:
        out2d = _idht_matmul(y2d, Wb, tm=tm, mode=mode, single_w=single_w)
        return out2d.reshape(*lead, L)

    rows = B // pack
    rem = B - rows * pack
    if rows == 0:
        # Batch smaller than the pack factor: tiny; plain XLA matmul suffices.
        return jnp.matmul(y2d, W).reshape(*lead, L)

    y_main = y2d if rem == 0 else y2d[: rows * pack]
    out_main = _idht_matmul(y_main.reshape(rows, N), Wb,   # contiguous -> free reshape
                            tm=tm, mode=mode, single_w=single_w)
    out_main = out_main.reshape(rows * pack, L)
    if rem == 0:
        out2d = out_main                                   # no pad, no slice
    else:
        # <= pack-1 leftover rows: tiny unpacked matmul instead of padding and
        # slicing the whole tensor through HBM.
        out_tail = jnp.matmul(y2d[rows * pack:], W)
        out2d = jnp.concatenate([out_main, out_tail], axis=0)
    return out2d.reshape(*lead, L)


# ----------------------------------------------------------------------------
# Module-equivalent wrapper
# ----------------------------------------------------------------------------
class InverseDiscreteHartleyTransform:
    """Inverse DHT (diffsptk-compatible) executed with Pallas TPU kernels.

    use_bf16=True computes in bf16 with f32 accumulation; recommended on v5e
    (and for large pack factors on v7x) where f32 MXU throughput / HBM
    bandwidth bind before bf16 precision matters.
    """

    def __init__(self, dht_length, dht_type=2, dtype=jnp.float32,
                 tm=None, use_bf16=False):
        assert 1 <= dht_length
        assert 1 <= dht_type <= 4
        self.dht_length = dht_length
        self.tm = tm
        self.pack = _pack_factor(dht_length)
        self.W = make_idht_matrix(dht_length, dht_type, dtype=dtype)
        Wb = make_packed_idht_matrix(self.W, self.pack)
        self.compute_dtype = jnp.bfloat16 if use_bf16 else None
        self.W_c = self.W.astype(jnp.bfloat16) if use_bf16 else self.W
        self.Wb = Wb.astype(jnp.bfloat16) if use_bf16 else Wb
        # TODO(synk): when the pack factor makes the packed matmul MXU-bound
        # in f32 (P*L/4 FLOP/byte above the f32 ridge, e.g. on v7x), prefer
        # use_bf16=True to restore the memory-bound regime.

    def __call__(self, y):
        assert y.shape[-1] == self.dht_length, "dimension of input"
        yc = y
        if self.compute_dtype is not None and y.dtype != self.compute_dtype:
            yc = y.astype(self.compute_dtype)
        single_w = _single_buffer_w_supported()
        out = _idht_apply(yc, self.W_c, self.Wb, pack=self.pack,
                          tm=self.tm, mode=None, single_w=single_w)
        return out.astype(y.dtype) if out.dtype != y.dtype else out


if __name__ == "__main__":
    L = 16
    key = jax.random.PRNGKey(0)
    y = jax.random.normal(key, (2, 4, 16, L), dtype=jnp.float32)

    idht = InverseDiscreteHartleyTransform(L, dht_type=2)
    out = jax.block_until_ready(idht(y))

    # Reference check (plain JAX matmul against the unpacked basis).
    ref = jnp.matmul(y, idht.W)
    assert out.shape == y.shape
    assert jnp.allclose(out, ref, atol=1e-4, rtol=1e-4)

    # Ragged batch (B not a multiple of the pack factor): remainder-row path.
    y2 = jax.random.normal(jax.random.PRNGKey(1), (3, 5, L), dtype=jnp.float32)
    out2 = jax.block_until_ready(idht(y2))
    assert jnp.allclose(out2, jnp.matmul(y2, idht.W), atol=1e-4, rtol=1e-4)

    # Round trip: DHT (type-2 basis via the type map) followed by IDHT ~ identity.
    dht_W = make_idht_matrix(L, dht_type=3)   # forward DHT type-2 basis
    x = jax.random.normal(jax.random.PRNGKey(2), (8, L), dtype=jnp.float32)
    x2 = jax.block_until_ready(idht(jnp.matmul(x, dht_W)))
    assert jnp.allclose(x2, x, atol=1e-3, rtol=1e-3)

    # bf16 compute path (f32 accumulation), looser tolerance.
    idht_bf = InverseDiscreteHartleyTransform(L, dht_type=2, use_bf16=True)
    out_bf = jax.block_until_ready(idht_bf(y))
    assert out_bf.dtype == y.dtype
    assert jnp.allclose(out_bf, ref, atol=1e-1, rtol=1e-1)

    # Exercise the blocked fallbacks (large-L / v7x VMEM paths) at a small size.
    L_big = 384
    W_big = make_idht_matrix(L_big, dht_type=2)
    yb = jax.random.normal(jax.random.PRNGKey(3), (64, L_big), dtype=jnp.float32)
    ref_b = jnp.matmul(yb, W_big)
    out_nb = jax.block_until_ready(
        _idht_matmul(yb, W_big, tm=64, mode="nblocked", single_w=False))
    assert jnp.allclose(out_nb, ref_b, atol=1e-3, rtol=1e-3)
    out_kb = jax.block_until_ready(
        _idht_matmul(yb, W_big, tm=64, mode="kblocked", single_w=False))
    assert jnp.allclose(out_kb, ref_b, atol=1e-3, rtol=1e-3)

    print("KERNEL_OK")
</pallas_src>

<mosaic_0001>
module attributes {stable_mosaic.version = 11 : i64} {
  func.func @_k(%arg0: i32, %arg1: memref<8x128xf32, #tpu.memory_space<vmem>>, %arg2: memref<8x128xf32, #tpu.memory_space<vmem>>, %arg3: memref<8x128xf32, #tpu.memory_space<vmem>>) attributes {dimension_semantics = [#tpu.dimension_semantics<arbitrary>], iteration_bounds = array<i64: 2>, scalar_prefetch = 0 : i64, scratch_operands = 0 : i64, tpu.core_type = #tpu.core_type<tc>, window_params = [{transform_indices = @transform_0, window_bounds = array<i64: 8, 128>}, {pipeline_mode = #tpu.pipeline_mode<synchronous>, transform_indices = @transform_1, window_bounds = array<i64: 8, 128>}, {transform_indices = @transform_2, window_bounds = array<i64: 8, 128>}]} {
    %c0 = arith.constant 0 : index
    %c0_0 = arith.constant 0 : index
    %0 = vector.load %arg1[%c0, %c0_0] : memref<8x128xf32, #tpu.memory_space<vmem>>, vector<8x128xf32>
    %c0_1 = arith.constant 0 : index
    %c0_2 = arith.constant 0 : index
    %1 = vector.load %arg2[%c0_1, %c0_2] : memref<8x128xf32, #tpu.memory_space<vmem>>, vector<8x128xf32>
    %2 = arith.addf %0, %1 : vector<8x128xf32>
    %c0_3 = arith.constant 0 : index
    %c0_4 = arith.constant 0 : index
    %3 = vector.load %arg3[%c0_3, %c0_4] : memref<8x128xf32, #tpu.memory_space<vmem>>, vector<8x128xf32>
    tpu.vector_store %arg3[%c0_3, %c0_4], %2 {strides = array<i32>} : memref<8x128xf32, #tpu.memory_space<vmem>>, vector<8x128xf32>,
    return
  }
  func.func @transform_0(%arg0: i32) -> (i32, i32) {
    %c0_i32 = arith.constant 0 : i32
    %c0_i32_0 = arith.constant 0 : i32
    return %arg0, %c0_i32 : i32, i32
  }
  func.func @transform_1(%arg0: i32) -> (i32, i32) {
    %c0_i32 = arith.constant 0 : i32
    %c0_i32_0 = arith.constant 0 : i32
    %c0_i32_1 = arith.constant 0 : i32
    return %c0_i32, %c0_i32_0 : i32, i32
  }
  func.func @transform_2(%arg0: i32) -> (i32, i32) {
    %c0_i32 = arith.constant 0 : i32
    %c0_i32_0 = arith.constant 0 : i32
    return %arg0, %c0_i32 : i32, i32
  }
}

module attributes {stable_mosaic.version = 11 : i64} {
  func.func @_idht_kernel(%arg0: i32, %arg1: memref<8x128xf32, #tpu.memory_space<vmem>>, %arg2: memref<128x128xf32, #tpu.memory_space<vmem>>, %arg3: memref<8x128xf32, #tpu.memory_space<vmem>>) attributes {dimension_semantics = [#tpu.dimension_semantics<parallel>], iteration_bounds = array<i64: 2>, scalar_prefetch = 0 : i64, scratch_operands = 0 : i64, tpu.core_type = #tpu.core_type<tc>, window_params = [{transform_indices = @transform_0, window_bounds = array<i64: 8, 128>}, {pipeline_mode = #tpu.pipeline_mode<synchronous>, transform_indices = @transform_1, window_bounds = array<i64: 128, 128>}, {transform_indices = @transform_2, window_bounds = array<i64: 8, 128>}]} {
    %c0 = arith.constant 0 : index
    %c0_0 = arith.constant 0 : index
    %0 = vector.load %arg1[%c0, %c0_0] : memref<8x128xf32, #tpu.memory_space<vmem>>, vector<8x128xf32>
    %c0_1 = arith.constant 0 : index
    %c0_2 = arith.constant 0 : index
    %1 = vector.load %arg2[%c0_1, %c0_2] : memref<128x128xf32, #tpu.memory_space<vmem>>, vector<128x128xf32>
    %cst = arith.constant dense<0.000000e+00> : vector<8x128xf32>
    %2 = tpu.matmul %0, %1, %cst {dimension_numbers = #tpu.dot_dimension_numbers<[1], [0], [0], [1], [0, 0, 1, 1], [], []>} : vector<8x128xf32>, vector<128x128xf32>, vector<8x128xf32> -> vector<8x128xf32>
    %c0_3 = arith.constant 0 : index
    %c0_4 = arith.constant 0 : index
    %3 = vector.load %arg3[%c0_3, %c0_4] : memref<8x128xf32, #tpu.memory_space<vmem>>, vector<8x128xf32>
    tpu.vector_store %arg3[%c0_3, %c0_4], %2 {strides = array<i32>} : memref<8x128xf32, #tpu.memory_space<vmem>>, vector<8x128xf32>,
    return
  }
  func.func @transform_0(%arg0: i32) -> (i32, i32) {
    %c0_i32 = arith.constant 0 : i32
    %c0_i32_0 = arith.constant 0 : i32
    return %arg0, %c0_i32 : i32, i32
  }
  func.func @transform_1(%arg0: i32) -> (i32, i32) {
    %c0_i32 = arith.constant 0 : i32
    %c0_i32_0 = arith.constant 0 : i32
    %c0_i32_1 = arith.constant 0 : i32
    return %c0_i32, %c0_i32_0 : i32, i32
  }
  func.func @transform_2(%arg0: i32) -> (i32, i32) {
    %c0_i32 = arith.constant 0 : i32
    %c0_i32_0 = arith.constant 0 : i32
    return %arg0, %c0_i32 : i32, i32
  }
}

</mosaic_0001>

<llo_original>
// kernel: tpu_custom_call.1
$region0: #{tpu_custom_call.1}
  #allocation0 [shape = 'u32[]', space=smem, size = 0x4, offset = 0x4, fixed_abs, tag = 'smem constant byte address 0x4 - core index']
  #allocation1 [shape = 'u32[72,128]{1,0:T(1,128)}', space=vmem, size = 0x9000, scoped, tag = 'internal scratch']
  %s0 = inlined_call_operand.hbm [shape: f32[16,128], index: 0, kind: input, shape index: {}]
  %s1 = inlined_call_operand.hbm [shape: f32[8,128], index: 1, kind: input, shape index: {}]
  %s2 = inlined_call_operand.hbm [shape: f32[16,128], index: 2, kind: output, shape index: {}]
  %s3 = sld [smem:[#allocation0]]
  $region49: #{tpu_custom_call.1} parent=0
    _
  %s5 = ssub.s32 1, %s3
  %s6 = scalar_select 0, %s5, %s3
  $region1: #{tpu_custom_call.1} parent=0
    #allocation2 [shape = 'u8[8192]{0}', space=vmem, size = 0x2000, scoped, tag = 'input window, operand 0']
    #allocation3 [shape = 's32[2]{0}', space=sflag, size = 0x8, scoped, tag = 'scoped memory for tpu_custom_call.1']
    #allocation4 [shape = 's32[2]{0}', space=sflag, size = 0x8, scoped, tag = 'scoped memory for tpu_custom_call.1']
    #allocation5 [shape = 'u8[4096]{0}', space=vmem, size = 0x1000, scoped, tag = 'input window, operand 1, single buffered']
    #allocation6 [shape = 's32[1]{0}', space=sflag, size = 0x4, scoped, tag = 'scoped memory for tpu_custom_call.1']
    #allocation7 [shape = 'u8[8192]{0}', space=vmem, size = 0x2000, scoped, tag = 'output window, operand 0']
    %7 = vsyncpa [#allocation3], 0
    %s8 = scalar_lea.sflag [#allocation3], 1
    %9 = vsyncpa %s8, 0
    %10 = vsyncpa [#allocation6], 0
    %11 = vsyncpa [#allocation4], 0
    %s12 = scalar_lea.sflag [#allocation4], 1
    %13 = vsyncpa %s12, 0
    loop: start=0, step=1, limit=4
    $region2: #{tpu_custom_call.1} parent=1 // loop_pre_header
      _
    $region3: #{tpu_custom_call.1} parent=1 // loop_header
      %s15 = sphi 0, %s19
      %p16 = scmp.ge.s32.totalorder %s15, 4
      %s25 = sphi 0, %s27
      %s28 = sphi 0, %s25
      %s29 = sphi 0, %s28
      %s45 = sphi 0, %s29
      %s49 = sphi 0, %s49
      %s51 = sphi 0, %s49
      %s52 = sphi 0, %s51
      %s66 = sphi 0, %s52
      %s72 = sphi 0, %s74
      %s75 = sphi 0, %s72
      %s76 = sphi 0, %s75
      %s92 = sphi 0, %s76
    $region4: #{tpu_custom_call.1} parent=1 // loop_header_branch
      %18 = sbr.rel (%p16) target = $region8
    $region5: #{tpu_custom_call.1} parent=1 // loop_body
      %s20 = ssub.s32 %s15, 1
      %s21 = ssub.s32 %s15, 2
      %s22 = sadd.s32 %s15, 1
      %s23 = ssub.s32 %s15, %s22
      %p24 = scmp.eq.s32.totalorder %s23, 0
      %s26 = sadd.s32 %s25, 1
      %s27 = scalar_select %p24, %s25, %s26
      %p30 = pneg %p24
      %p31 = scmp.eq.s32.totalorder %s15, 1
      %p32 = por %p30, %p31
      %p33 = scmp.ne.s32.totalorder %s25, %s28
      %p34 = scmp.eq.s32.totalorder %s15, 0
      %p35 = por %p33, %p34
      %p36 = scmp.ne.s32.totalorder %s25, %s28
      %p37 = scmp.eq.s32.totalorder %s20, 1
      %p38 = por %p36, %p37
      %p39 = scmp.ne.s32.totalorder %s28, %s29
      %p40 = scmp.eq.s32.totalorder %s20, 0
      %p41 = por %p39, %p40
      %p42 = scmp.ne.s32.totalorder %s28, %s29
      %p43 = scmp.eq.s32.totalorder %s21, 1
      %p44 = por %p42, %p43
      %p46 = scmp.ne.s32.totalorder %s29, %s45
      %p47 = scmp.eq.s32.totalorder %s21, 0
      %p48 = por %p46, %p47
      %s50 = sadd.s32 %s49, 1
      %p53 = scmp.eq.s32.totalorder %s15, 1
      %p54 = scmp.ne.s32.totalorder %s49, %s51
      %p55 = scmp.eq.s32.totalorder %s15, 0
      %p56 = por %p54, %p55
      %p57 = scmp.ne.s32.totalorder %s49, %s51
      %p58 = scmp.eq.s32.totalorder %s20, 1
      %p59 = por %p57, %p58
      %p60 = scmp.ne.s32.totalorder %s51, %s52
      %p61 = scmp.eq.s32.totalorder %s20, 0
      %p62 = por %p60, %p61
      %p63 = scmp.ne.s32.totalorder %s51, %s52
      %p64 = scmp.eq.s32.totalorder %s21, 1
      %p65 = por %p63, %p64
      %p67 = scmp.ne.s32.totalorder %s52, %s66
      %p68 = scmp.eq.s32.totalorder %s21, 0
      %p69 = por %p67, %p68
      %s70 = ssub.s32 %s15, %s22
      %p71 = scmp.eq.s32.totalorder %s70, 0
      %s73 = sadd.s32 %s72, 1
      %s74 = scalar_select %p71, %s72, %s73
      %p77 = pneg %p71
      %p78 = scmp.eq.s32.totalorder %s15, 1
      %p79 = por %p77, %p78
      %p80 = scmp.ne.s32.totalorder %s72, %s75
      %p81 = scmp.eq.s32.totalorder %s15, 0
      %p82 = por %p80, %p81
      %p83 = scmp.ne.s32.totalorder %s72, %s75
      %p84 = scmp.eq.s32.totalorder %s20, 1
      %p85 = por %p83, %p84
      %p86 = scmp.ne.s32.totalorder %s75, %s76
      %p87 = scmp.eq.s32.totalorder %s20, 0
      %p88 = por %p86, %p87
      %p89 = scmp.ne.s32.totalorder %s75, %s76
      %p90 = scmp.eq.s32.totalorder %s21, 1
      %p91 = por %p89, %p90
      %p93 = scmp.ne.s32.totalorder %s76, %s92
      %p94 = scmp.eq.s32.totalorder %s21, 0
      %p95 = por %p93, %p94
      %p96 = scmp.le.s32.totalorder 1, %s15
      %p97 = scmp.lt.s32.totalorder %s15, 3
      %p98 = pnand %p96, %p97
      %p99 = pneg %p98
      // Predicated region
      $region9: #{tpu_custom_call.1} parent=5 // pred_check
        _
      $region10: #{tpu_custom_call.1} parent=5 // pred_check_branch
        %101 = sbr.rel (%p98) target = $region12
      $region11: #{tpu_custom_call.1} parent=5 // pred_region
        %s102 = ssub.s32 %s15, 1
        // Predicated region
        $region13: #{tpu_custom_call.1} parent=11 // pred_check
          %p103 = pneg %p62
        $region14: #{tpu_custom_call.1} parent=11 // pred_check_branch
          %105 = sbr.rel (%p103) target = $region16
        $region15: #{tpu_custom_call.1} parent=11 // pred_region
          %107 = vsyncadd [#allocation6], 0
          %s109 = sshll.u32 %s1, 4
          %s110 = int_to_ptr.hbm [resolvable:$true] %s109
          %s111 = sshll.u32 [#allocation5], 4
          %s112 = int_to_ptr.vmem [resolvable:$true] %s111
          %114 = dma.hbm_to_vmem [thread:$0]  %s110, 128, %s112, [#allocation6]
        $region16: #{tpu_custom_call.1} parent=11 // pred_fallthru
          _
      $region12: #{tpu_custom_call.1} parent=5 // pred_fallthru
        _
      %p115 = scmp.lt.s32.totalorder %s15, 2
      // Predicated region
      $region17: #{tpu_custom_call.1} parent=5 // pred_check
        %p116 = pneg %p115
      $region18: #{tpu_custom_call.1} parent=5 // pred_check_branch
        %118 = sbr.rel (%p116) target = $region20
      $region19: #{tpu_custom_call.1} parent=5 // pred_region
        // Predicated region
        $region21: #{tpu_custom_call.1} parent=19 // pred_check
          %p119 = pneg %p35
        $region22: #{tpu_custom_call.1} parent=19 // pred_check_branch
          %121 = sbr.rel (%p119) target = $region24
        $region23: #{tpu_custom_call.1} parent=19 // pred_region
          %s122 = sand.u32 %s25, 1
          %s123 = scalar_lea.sflag [#allocation3], %s122
          %s124 = sand.u32 %s25, 1
          %s125 = smul.addr %s124, 8
          %s126 = scalar_lea.vmem [#allocation2], %s125
          %128 = vsyncadd %s123, 0
          %s129 = smul.addr %s15, 8
          %s130 = scalar_lea.hbm %s0, %s129
          %s132 = sshll.u32 %s130, 4
          %s133 = int_to_ptr.hbm [resolvable:$true] %s132
          %s134 = sshll.u32 %s126, 4
          %s135 = int_to_ptr.vmem [resolvable:$true] %s134
          %137 = dma.hbm_to_vmem [thread:$0]  %s133, 128, %s135, %s123
        $region24: #{tpu_custom_call.1} parent=19 // pred_fallthru
          _
      $region20: #{tpu_custom_call.1} parent=5 // pred_fallthru
        _
      %p138 = scmp.le.s32.totalorder 1, %s15
      %p139 = scmp.lt.s32.totalorder %s15, 3
      %p140 = pnand %p138, %p139
      %p141 = pneg %p140
      // Predicated region
      $region25: #{tpu_custom_call.1} parent=5 // pred_check
        _
      $region26: #{tpu_custom_call.1} parent=5 // pred_check_branch
        %143 = sbr.rel (%p140) target = $region28
      $region27: #{tpu_custom_call.1} parent=5 // pred_region
        %s144 = ssub.s32 %s15, 1
        %s145 = sand.u32 %s28, 1
        %s146 = scalar_lea.sflag [#allocation3], %s145
        %s147 = sand.u32 %s28, 1
        %s148 = smul.addr %s147, 8
        %s149 = scalar_lea.vmem [#allocation2], %s148
        // Predicated region
        $region29: #{tpu_custom_call.1} parent=27 // pred_check
          %p150 = pneg %p41
        $region30: #{tpu_custom_call.1} parent=27 // pred_check_branch
          %152 = sbr.rel (%p150) target = $region32
        $region31: #{tpu_custom_call.1} parent=27 // pred_region
          %154 = dma.done %s146, 128
        $region32: #{tpu_custom_call.1} parent=27 // pred_fallthru
          _
        // Predicated region
        $region33: #{tpu_custom_call.1} parent=27 // pred_check
          %p155 = pneg %p62
        $region34: #{tpu_custom_call.1} parent=27 // pred_check_branch
          %157 = sbr.rel (%p155) target = $region36
        $region35: #{tpu_custom_call.1} parent=27 // pred_region
          %159 = dma.done [#allocation6], 128
        $region36: #{tpu_custom_call.1} parent=27 // pred_fallthru
          _
        %s160 = sand.u32 %s28, 1
        %s161 = scalar_lea.sflag [#allocation3], %s160
        %s162 = sand.u32 %s28, 1
        %s163 = smul.addr %s162, 8
        %s164 = scalar_lea.vmem [#allocation2], %s163
        %p165 = pneg %p41
        %p166 = pneg %p38
        %p167 = pneg %p62
        %p168 = pneg %p59
        %p169 = pneg %p88
        %p170 = pneg %p85
        %s171 = sand.u32 %s75, 1
        %s172 = scalar_lea.sflag [#allocation4], %s171
        %s173 = sand.u32 %s75, 1
        %s174 = smul.addr %s173, 8
        %s175 = scalar_lea.vmem [#allocation7], %s174
        %v176 = vld [vmem:[%s149] sm:$0xff]
        %v177 = vld [vmem:[#allocation5] sm:$0xff]
        %v178 = vadd.f32 %v176, %v177
        %179 = vst [vmem:[%s175] sm:$0xff] %v178
        %s180 = sand.u32 %s75, 1
        %s181 = scalar_lea.sflag [#allocation4], %s180
        %s182 = sand.u32 %s75, 1
        %s183 = smul.addr %s182, 8
        %s184 = scalar_lea.vmem [#allocation7], %s183
        // Predicated region
        $region37: #{tpu_custom_call.1} parent=27 // pred_check
          %p185 = pneg %p85
        $region38: #{tpu_custom_call.1} parent=27 // pred_check_branch
          %187 = sbr.rel (%p185) target = $region40
        $region39: #{tpu_custom_call.1} parent=27 // pred_region
          %189 = vsyncadd %s181, 0
          %s190 = smul.addr %s20, 8
          %s191 = scalar_lea.hbm %s2, %s190
          %s193 = sshll.u32 %s184, 4
          %s194 = int_to_ptr.vmem [resolvable:$true] %s193
          %s195 = sshll.u32 %s191, 4
          %s196 = int_to_ptr.hbm [resolvable:$true] %s195
          %198 = dma.vmem_to_hbm [thread:$0]  %s194, 128, %s196, %s181
        $region40: #{tpu_custom_call.1} parent=27 // pred_fallthru
          _
      $region28: #{tpu_custom_call.1} parent=5 // pred_fallthru
        _
      %p199 = scmp.le.s32.totalorder 2, %s15
      // Predicated region
      $region41: #{tpu_custom_call.1} parent=5 // pred_check
        %p200 = pneg %p199
      $region42: #{tpu_custom_call.1} parent=5 // pred_check_branch
        %202 = sbr.rel (%p200) target = $region44
      $region43: #{tpu_custom_call.1} parent=5 // pred_region
        %s203 = ssub.s32 %s15, 2
        // Predicated region
        $region45: #{tpu_custom_call.1} parent=43 // pred_check
          %p204 = pneg %p91
        $region46: #{tpu_custom_call.1} parent=43 // pred_check_branch
          %206 = sbr.rel (%p204) target = $region48
        $region47: #{tpu_custom_call.1} parent=43 // pred_region
          %s207 = sand.u32 %s76, 1
          %s208 = scalar_lea.sflag [#allocation4], %s207
          %s209 = sand.u32 %s76, 1
          %s210 = smul.addr %s209, 8
          %s211 = scalar_lea.vmem [#allocation7], %s210
          %213 = dma.done %s208, 128
        $region48: #{tpu_custom_call.1} parent=43 // pred_fallthru
          _
      $region44: #{tpu_custom_call.1} parent=5 // pred_fallthru
        _
    $region6: #{tpu_custom_call.1} parent=1 // loop_footer
      %s19 = sadd.s32 1, %s15
    $region7: #{tpu_custom_call.1} parent=1 // loop_footer_branch
      %14 = sbr.rel target = $region3
    $region8: #{tpu_custom_call.1} parent=1 // loop_exit
      _
    %214 = vsyncpa [#allocation3], 1
    %s215 = scalar_lea.sflag [#allocation3], 1
    %216 = vsyncpa %s215, 1
    %217 = vsyncpa [#allocation6], 1
    %218 = vsyncpa [#allocation4], 1
    %s219 = scalar_lea.sflag [#allocation4], 1
    %220 = vsyncpa %s219, 1

// kernel: _idht_matmul.1
$region0: #{_idht_matmul.1}
  #allocation0 [shape = 'u32[]', space=smem, size = 0x4, offset = 0x4, fixed_abs, tag = 'smem constant byte address 0x4 - core index']
  #allocation1 [shape = 'u32[72,128]{1,0:T(1,128)}', space=vmem, size = 0x9000, scoped, tag = 'internal scratch']
  %s0 = inlined_call_operand.hbm [shape: f32[16,128], index: 0, kind: input, shape index: {}]
  %s1 = inlined_call_operand.hbm [shape: f32[128,128], index: 1, kind: input, shape index: {}]
  %s2 = inlined_call_operand.hbm [shape: f32[16,128], index: 2, kind: output, shape index: {}]
  %s3 = sld [smem:[#allocation0]]
  $region49: #{_idht_matmul.1} parent=0
    _
  %s5 = ssub.s32 1, %s3
  %s6 = scalar_select 0, %s5, %s3
  $region1: #{_idht_matmul.1} parent=0
    #allocation2 [shape = 'u8[8192]{0}', space=vmem, size = 0x2000, scoped, tag = 'input window, operand 0']
    #allocation3 [shape = 's32[2]{0}', space=sflag, size = 0x8, scoped, tag = 'scoped memory for _idht_matmul.1']
    #allocation4 [shape = 's32[2]{0}', space=sflag, size = 0x8, scoped, tag = 'scoped memory for _idht_matmul.1']
    #allocation5 [shape = 'u8[65536]{0}', space=vmem, size = 0x10000, scoped, tag = 'input window, operand 1, single buffered']
    #allocation6 [shape = 's32[1]{0}', space=sflag, size = 0x4, scoped, tag = 'scoped memory for _idht_matmul.1']
    #allocation7 [shape = 'u8[8192]{0}', space=vmem, size = 0x2000, scoped, tag = 'output window, operand 0']
    %7 = vsyncpa [#allocation3], 0
    %s8 = scalar_lea.sflag [#allocation3], 1
    %9 = vsyncpa %s8, 0
    %10 = vsyncpa [#allocation6], 0
    %11 = vsyncpa [#allocation4], 0
    %s12 = scalar_lea.sflag [#allocation4], 1
    %13 = vsyncpa %s12, 0
    loop: start=0, step=1, limit=4
    $region2: #{_idht_matmul.1} parent=1 // loop_pre_header
      _
    $region3: #{_idht_matmul.1} parent=1 // loop_header
      %s15 = sphi 0, %s19
      %p16 = scmp.ge.s32.totalorder %s15, 4
      %s25 = sphi 0, %s27
      %s28 = sphi 0, %s25
      %s29 = sphi 0, %s28
      %s45 = sphi 0, %s29
      %s49 = sphi 0, %s49
      %s51 = sphi 0, %s49
      %s52 = sphi 0, %s51
      %s66 = sphi 0, %s52
      %s72 = sphi 0, %s74
      %s75 = sphi 0, %s72
      %s76 = sphi 0, %s75
      %s92 = sphi 0, %s76
    $region4: #{_idht_matmul.1} parent=1 // loop_header_branch
      %18 = sbr.rel (%p16) target = $region8
    $region5: #{_idht_matmul.1} parent=1 // loop_body
      %s20 = ssub.s32 %s15, 1
      %s21 = ssub.s32 %s15, 2
      %s22 = sadd.s32 %s15, 1
      %s23 = ssub.s32 %s15, %s22
      %p24 = scmp.eq.s32.totalorder %s23, 0
      %s26 = sadd.s32 %s25, 1
      %s27 = scalar_select %p24, %s25, %s26
      %p30 = pneg %p24
      %p31 = scmp.eq.s32.totalorder %s15, 1
      %p32 = por %p30, %p31
      %p33 = scmp.ne.s32.totalorder %s25, %s28
      %p34 = scmp.eq.s32.totalorder %s15, 0
      %p35 = por %p33, %p34
      %p36 = scmp.ne.s32.totalorder %s25, %s28
      %p37 = scmp.eq.s32.totalorder %s20, 1
      %p38 = por %p36, %p37
      %p39 = scmp.ne.s32.totalorder %s28, %s29
      %p40 = scmp.eq.s32.totalorder %s20, 0
      %p41 = por %p39, %p40
      %p42 = scmp.ne.s32.totalorder %s28, %s29
      %p43 = scmp.eq.s32.totalorder %s21, 1
      %p44 = por %p42, %p43
      %p46 = scmp.ne.s32.totalorder %s29, %s45
      %p47 = scmp.eq.s32.totalorder %s21, 0
      %p48 = por %p46, %p47
      %s50 = sadd.s32 %s49, 1
      %p53 = scmp.eq.s32.totalorder %s15, 1
      %p54 = scmp.ne.s32.totalorder %s49, %s51
      %p55 = scmp.eq.s32.totalorder %s15, 0
      %p56 = por %p54, %p55
      %p57 = scmp.ne.s32.totalorder %s49, %s51
      %p58 = scmp.eq.s32.totalorder %s20, 1
      %p59 = por %p57, %p58
      %p60 = scmp.ne.s32.totalorder %s51, %s52
      %p61 = scmp.eq.s32.totalorder %s20, 0
      %p62 = por %p60, %p61
      %p63 = scmp.ne.s32.totalorder %s51, %s52
      %p64 = scmp.eq.s32.totalorder %s21, 1
      %p65 = por %p63, %p64
      %p67 = scmp.ne.s32.totalorder %s52, %s66
      %p68 = scmp.eq.s32.totalorder %s21, 0
      %p69 = por %p67, %p68
      %s70 = ssub.s32 %s15, %s22
      %p71 = scmp.eq.s32.totalorder %s70, 0
      %s73 = sadd.s32 %s72, 1
      %s74 = scalar_select %p71, %s72, %s73
      %p77 = pneg %p71
      %p78 = scmp.eq.s32.totalorder %s15, 1
      %p79 = por %p77, %p78
      %p80 = scmp.ne.s32.totalorder %s72, %s75
      %p81 = scmp.eq.s32.totalorder %s15, 0
      %p82 = por %p80, %p81
      %p83 = scmp.ne.s32.totalorder %s72, %s75
      %p84 = scmp.eq.s32.totalorder %s20, 1
      %p85 = por %p83, %p84
      %p86 = scmp.ne.s32.totalorder %s75, %s76
      %p87 = scmp.eq.s32.totalorder %s20, 0
      %p88 = por %p86, %p87
      %p89 = scmp.ne.s32.totalorder %s75, %s76
      %p90 = scmp.eq.s32.totalorder %s21, 1
      %p91 = por %p89, %p90
      %p93 = scmp.ne.s32.totalorder %s76, %s92
      %p94 = scmp.eq.s32.totalorder %s21, 0
      %p95 = por %p93, %p94
      %p96 = scmp.le.s32.totalorder 1, %s15
      %p97 = scmp.lt.s32.totalorder %s15, 3
      %p98 = pnand %p96, %p97
      %p99 = pneg %p98
      // Predicated region
      $region9: #{_idht_matmul.1} parent=5 // pred_check
        _
      $region10: #{_idht_matmul.1} parent=5 // pred_check_branch
        %101 = sbr.rel (%p98) target = $region12
      $region11: #{_idht_matmul.1} parent=5 // pred_region
        %s102 = ssub.s32 %s15, 1
        // Predicated region
        $region13: #{_idht_matmul.1} parent=11 // pred_check
          %p103 = pneg %p62
        $region14: #{_idht_matmul.1} parent=11 // pred_check_branch
          %105 = sbr.rel (%p103) target = $region16
        $region15: #{_idht_matmul.1} parent=11 // pred_region
          %107 = vsyncadd [#allocation6], 0
          %s108 = sshll.u32 %s1, 4
          %s109 = int_to_ptr.hbm [resolvable:$true] %s108
          %s110 = sshll.u32 [#allocation5], 4
          %s111 = int_to_ptr.vmem [resolvable:$true] %s110
          %116 = dma.hbm_to_vmem [thread:$0]  %s109, 2048, %s111, [#allocation6], 128, 128, 8
        $region16: #{_idht_matmul.1} parent=11 // pred_fallthru
          _
      $region12: #{_idht_matmul.1} parent=5 // pred_fallthru
        _
      %p117 = scmp.lt.s32.totalorder %s15, 2
      // Predicated region
      $region17: #{_idht_matmul.1} parent=5 // pred_check
        %p118 = pneg %p117
      $region18: #{_idht_matmul.1} parent=5 // pred_check_branch
        %120 = sbr.rel (%p118) target = $region20
      $region19: #{_idht_matmul.1} parent=5 // pred_region
        // Predicated region
        $region21: #{_idht_matmul.1} parent=19 // pred_check
          %p121 = pneg %p35
        $region22: #{_idht_matmul.1} parent=19 // pred_check_branch
          %123 = sbr.rel (%p121) target = $region24
        $region23: #{_idht_matmul.1} parent=19 // pred_region
          %s124 = sand.u32 %s25, 1
          %s125 = scalar_lea.sflag [#allocation3], %s124
          %s126 = sand.u32 %s25, 1
          %s127 = smul.addr %s126, 8
          %s128 = scalar_lea.vmem [#allocation2], %s127
          %130 = vsyncadd %s125, 0
          %s131 = smul.addr %s15, 8
          %s132 = scalar_lea.hbm %s0, %s131
          %s134 = sshll.u32 %s132, 4
          %s135 = int_to_ptr.hbm [resolvable:$true] %s134
          %s136 = sshll.u32 %s128, 4
          %s137 = int_to_ptr.vmem [resolvable:$true] %s136
          %139 = dma.hbm_to_vmem [thread:$0]  %s135, 128, %s137, %s125
        $region24: #{_idht_matmul.1} parent=19 // pred_fallthru
          _
      $region20: #{_idht_matmul.1} parent=5 // pred_fallthru
        _
      %p140 = scmp.le.s32.totalorder 1, %s15
      %p141 = scmp.lt.s32.totalorder %s15, 3
      %p142 = pnand %p140, %p141
      %p143 = pneg %p142
      // Predicated region
      $region25: #{_idht_matmul.1} parent=5 // pred_check
        _
      $region26: #{_idht_matmul.1} parent=5 // pred_check_branch
        %145 = sbr.rel (%p142) target = $region28
      $region27: #{_idht_matmul.1} parent=5 // pred_region
        %s146 = ssub.s32 %s15, 1
        %s147 = sand.u32 %s28, 1
        %s148 = scalar_lea.sflag [#allocation3], %s147
        %s149 = sand.u32 %s28, 1
        %s150 = smul.addr %s149, 8
        %s151 = scalar_lea.vmem [#allocation2], %s150
        // Predicated region
        $region29: #{_idht_matmul.1} parent=27 // pred_check
          %p152 = pneg %p41
        $region30: #{_idht_matmul.1} parent=27 // pred_check_branch
          %154 = sbr.rel (%p152) target = $region32
        $region31: #{_idht_matmul.1} parent=27 // pred_region
          %156 = dma.done %s148, 128
        $region32: #{_idht_matmul.1} parent=27 // pred_fallthru
          _
        // Predicated region
        $region33: #{_idht_matmul.1} parent=27 // pred_check
          %p157 = pneg %p62
        $region34: #{_idht_matmul.1} parent=27 // pred_check_branch
          %159 = sbr.rel (%p157) target = $region36
        $region35: #{_idht_matmul.1} parent=27 // pred_region
          %161 = dma.done [#allocation6], 2048
        $region36: #{_idht_matmul.1} parent=27 // pred_fallthru
          _
        %s162 = sand.u32 %s28, 1
        %s163 = scalar_lea.sflag [#allocation3], %s162
        %s164 = sand.u32 %s28, 1
        %s165 = smul.addr %s164, 8
        %s166 = scalar_lea.vmem [#allocation2], %s165
        %p167 = pneg %p41
        %p168 = pneg %p38
        %p169 = pneg %p62
        %p170 = pneg %p59
        %p171 = pneg %p88
        %p172 = pneg %p85
        %s173 = sand.u32 %s75, 1
        %s174 = scalar_lea.sflag [#allocation4], %s173
        %s175 = sand.u32 %s75, 1
        %s176 = smul.addr %s175, 8
        %s177 = scalar_lea.vmem [#allocation7], %s176
        %v178 = vld [vmem:[%s151] sm:$0xff]
        %v179 = vld [vmem:[#allocation5] sm:$0xff]
        %v180 = vld [vmem:[#allocation5 + $0x8] sm:$0xff]
        %v181 = vld [vmem:[#allocation5 + $0x10] sm:$0xff]
        %v182 = vld [vmem:[#allocation5 + $0x18] sm:$0xff]
        %v183 = vld [vmem:[#allocation5 + $0x20] sm:$0xff]
        %v184 = vld [vmem:[#allocation5 + $0x28] sm:$0xff]
        %v185 = vld [vmem:[#allocation5 + $0x30] sm:$0xff]
        %v186 = vld [vmem:[#allocation5 + $0x38] sm:$0xff]
        %v187 = vld [vmem:[#allocation5 + $0x40] sm:$0xff]
        %v188 = vld [vmem:[#allocation5 + $0x48] sm:$0xff]
        %v189 = vld [vmem:[#allocation5 + $0x50] sm:$0xff]
        %v190 = vld [vmem:[#allocation5 + $0x58] sm:$0xff]
        %v191 = vld [vmem:[#allocation5 + $0x60] sm:$0xff]
        %v192 = vld [vmem:[#allocation5 + $0x68] sm:$0xff]
        %v193 = vld [vmem:[#allocation5 + $0x70] sm:$0xff]
        %v194 = vld [vmem:[#allocation5 + $0x78] sm:$0xff]
        %195 = vmatpush.msra.mxu0 %v194
        %196 = vmatpush.msra.mxu0 %v193
        %197 = vmatpush.msra.mxu0 %v192
        %198 = vmatpush.msra.mxu0 %v191
        %199 = vmatpush.msra.mxu0 %v190
        %200 = vmatpush.msra.mxu0 %v189
        %201 = vmatpush.msra.mxu0 %v188
        %202 = vmatpush.msra.mxu0 %v187
        %203 = vmatpush.msra.mxu0 %v186
        %204 = vmatpush.msra.mxu0 %v185
        %205 = vmatpush.msra.mxu0 %v184
        %206 = vmatpush.msra.mxu0 %v183
        %207 = vmatpush.msra.mxu0 %v182
        %208 = vmatpush.msra.mxu0 %v181
        %209 = vmatpush.msra.mxu0 %v180
        %210 = vmatpush.msra.mxu0 %v179
        %211 = vmatmul.f32.gmra.mxu0 %v178
        %v212 = vpop.f32.mrf.mxu0
        %v213 = vadd.f32 0.0, %v212
        %214 = vdwg.mxu0
        %215 = vst [vmem:[%s177] sm:$0xff] %v213
        %s216 = sand.u32 %s75, 1
        %s217 = scalar_lea.sflag [#allocation4], %s216
        %s218 = sand.u32 %s75, 1
        %s219 = smul.addr %s218, 8
        %s220 = scalar_lea.vmem [#allocation7], %s219
        // Predicated region
        $region37: #{_idht_matmul.1} parent=27 // pred_check
          %p221 = pneg %p85
        $region38: #{_idht_matmul.1} parent=27 // pred_check_branch
          %223 = sbr.rel (%p221) target = $region40
        $region39: #{_idht_matmul.1} parent=27 // pred_region
          %225 = vsyncadd %s217, 0
          %s226 = smul.addr %s20, 8
          %s227 = scalar_lea.hbm %s2, %s226
          %s229 = sshll.u32 %s220, 4
          %s230 = int_to_ptr.vmem [resolvable:$true] %s229
          %s231 = sshll.u32 %s227, 4
          %s232 = int_to_ptr.hbm [resolvable:$true] %s231
          %234 = dma.vmem_to_hbm [thread:$0]  %s230, 128, %s232, %s217
        $region40: #{_idht_matmul.1} parent=27 // pred_fallthru
          _
      $region28: #{_idht_matmul.1} parent=5 // pred_fallthru
        _
      %p235 = scmp.le.s32.totalorder 2, %s15
      // Predicated region
      $region41: #{_idht_matmul.1} parent=5 // pred_check
        %p236 = pneg %p235
      $region42: #{_idht_matmul.1} parent=5 // pred_check_branch
        %238 = sbr.rel (%p236) target = $region44
      $region43: #{_idht_matmul.1} parent=5 // pred_region
        %s239 = ssub.s32 %s15, 2
        // Predicated region
        $region45: #{_idht_matmul.1} parent=43 // pred_check
          %p240 = pneg %p91
        $region46: #{_idht_matmul.1} parent=43 // pred_check_branch
          %242 = sbr.rel (%p240) target = $region48
        $region47: #{_idht_matmul.1} parent=43 // pred_region
          %s243 = sand.u32 %s76, 1
          %s244 = scalar_lea.sflag [#allocation4], %s243
          %s245 = sand.u32 %s76, 1
          %s246 = smul.addr %s245, 8
          %s247 = scalar_lea.vmem [#allocation7], %s246
          %249 = dma.done %s244, 128
        $region48: #{_idht_matmul.1} parent=43 // pred_fallthru
          _
      $region44: #{_idht_matmul.1} parent=5 // pred_fallthru
        _
    $region6: #{_idht_matmul.1} parent=1 // loop_footer
      %s19 = sadd.s32 1, %s15
    $region7: #{_idht_matmul.1} parent=1 // loop_footer_branch
      %14 = sbr.rel target = $region3
    $region8: #{_idht_matmul.1} parent=1 // loop_exit
      _
    %250 = vsyncpa [#allocation3], 1
    %s251 = scalar_lea.sflag [#allocation3], 1
    %252 = vsyncpa %s251, 1
    %253 = vsyncpa [#allocation6], 1
    %254 = vsyncpa [#allocation4], 1
    %s255 = scalar_lea.sflag [#allocation4], 1
    %256 = vsyncpa %s255, 1

</llo_original>
